<compile_context>
chip_gen: v7x
topology: tpu7x:2x2x1
jax: 0.10.0
libtpu: 0.0.40
codegen_flags: <defaults>
</compile_context>

<pallas_src>
from functools import partial

import jax
import jax.numpy as jnp
from jax.experimental import pallas as pl
from jax.experimental.pallas import tpu as pltpu

_LANE = 128
_TM_MAX = 4096  # rows per tile -> (4096, 128) f32 = 2 MiB per input per buffer


def _round_up(x, m):
    return (x + m - 1) // m * m


def _sublane_multiple(dtype):
    # Minimum sublane tile for the dtype: f32 -> 8, bf16 -> 16, 8-bit -> 32.
    return {4: 8, 2: 16, 1: 32}.get(jnp.dtype(dtype).itemsize, 8)


def _num_tensorcores():
    """Best-effort TensorCores-per-chip count (2 on v7x, 1 on v5e/v6e)."""
    try:
        info = pltpu.get_tpu_info()
    except Exception:
        return 1
    for attr in ("num_cores", "core_count", "num_tensorcores",
                 "tensorcores_per_chip", "cores_per_chip"):
        v = getattr(info, attr, None)
        if isinstance(v, int) and 1 <= v <= 8:
            return v
    return 1


def _focal_loss_kernel(pred_ref, gt_ref, out_ref, *, tm, rows, tiles_per_core,
                       total_tiles, need_tail_mask):
    c = pl.program_id(0)  # core-split axis ("parallel")
    i = pl.program_id(1)  # row-tile axis  ("arbitrary", accumulator carry)

    # Zero this core's (1, 8, 128) partial-sum block at the start of its loop.
    @pl.when(i == 0)
    def _():
        out_ref[...] = jnp.zeros_like(out_ref)

    pred = pred_ref[...].astype(jnp.float32)
    gt = gt_ref[...].astype(jnp.float32)

    is_pos = gt >= 0.5
    one_minus_pred = 1.0 - pred

    # Single log per element: select the log argument and the (square-rooted)
    # weight instead of computing both branches and masking one away.
    #   pos: -log(pred + 1e-4)     * (1 - pred)^2
    #   neg: -log(1 - pred + 1e-4) * (pred * gt)^2     (== pred^2 * gt^2)
    arg = jnp.where(is_pos, pred, one_minus_pred)
    w = jnp.where(is_pos, one_minus_pred, pred * gt)
    loss = -jnp.log(arg + 0.0001) * (w * w)

    def _accumulate(l):
        # vreg-shaped accumulation: (tm,128) -> (tm//8,8,128) -> sum(axis=0) is
        # pure VPU adds; the final cross-lane reduce happens once in the wrapper.
        out_ref[...] += l.reshape(tm // 8, 8, _LANE).sum(axis=0)[None, :, :]

    if need_tail_mask:
        tile_global = c * tiles_per_core + i
        last_tile = total_tiles - 1

        # Steady state: unmasked accumulate (no iota / compare / select).
        @pl.when(tile_global < last_tile)
        def _():
            _accumulate(loss)

        # Last real tile + any duplicated (clamped) dummy tile: mask rows past
        # the logical end of the flattened input.
        @pl.when(tile_global >= last_tile)
        def _():
            row_ids = tile_global * tm + jax.lax.broadcasted_iota(
                jnp.int32, (tm, 1), 0)
            _accumulate(jnp.where(row_ids < rows, loss, 0.0))
    else:
        _accumulate(loss)


def focal_loss(pred, gt, src=None):
    """Pallas implementation of FocalLoss.forward(out, target, src).

    pred, gt: (batch, c, h, w) arrays (f32 or bf16) with values in [0, 1).
    src is accepted for signature parity but unused (as in the reference).
    Returns a scalar float32 loss.
    """
    assert pred.shape == gt.shape
    n = pred.size

    # Flatten (free view). Pad only the sub-128 lane tail if needed; padding
    # with pred=0, gt=0 contributes exactly 0 to the loss.
    pred_flat = pred.reshape(-1)
    gt_flat = gt.reshape(-1)
    if n % _LANE != 0:
        pad = _LANE - n % _LANE
        pred_flat = jnp.pad(pred_flat, (0, pad))
        gt_flat = jnp.pad(gt_flat, (0, pad))

    rows = pred_flat.size // _LANE
    pred2d = pred_flat.reshape(rows, _LANE)
    gt2d = gt_flat.reshape(rows, _LANE)

    # Dtype-aware sublane rounding (f32: 8, bf16: 16) so bf16 inputs can stay
    # bf16 through the BlockSpec (halves HBM bytes; kernel upcasts in-register).
    sub = max(_sublane_multiple(pred2d.dtype), _sublane_multiple(gt2d.dtype))
    tm = min(_TM_MAX, _round_up(rows, sub))

    total_tiles = pl.cdiv(rows, tm)
    num_cores = min(_num_tensorcores(), total_tiles)   # collapse on 1-TC chips
    tiles_per_core = pl.cdiv(total_tiles, num_cores)
    even_split = num_cores * tiles_per_core == total_tiles
    need_tail_mask = (rows % tm != 0) or (not even_split)

    if even_split:
        def in_map(c, i):
            return (c * tiles_per_core + i, 0)
    else:
        def in_map(c, i):
            # Clamp so the DMA never starts past the last valid block; the
            # duplicated block is fully masked inside the kernel.
            return (jnp.minimum(c * tiles_per_core + i, total_tiles - 1), 0)

    kernel = partial(_focal_loss_kernel, tm=tm, rows=rows,
                     tiles_per_core=tiles_per_core, total_tiles=total_tiles,
                     need_tail_mask=need_tail_mask)

    out = pl.pallas_call(
        kernel,
        out_shape=jax.ShapeDtypeStruct((num_cores, 8, _LANE), jnp.float32),
        grid_spec=pltpu.PrefetchScalarGridSpec(
            num_scalar_prefetch=0,
            grid=(num_cores, tiles_per_core),
            in_specs=[
                pl.BlockSpec((tm, _LANE), in_map),
                pl.BlockSpec((tm, _LANE), in_map),
            ],
            out_specs=pl.BlockSpec((1, 8, _LANE), lambda c, i: (c, 0, 0)),
        ),
        compiler_params=pltpu.CompilerParams(
            dimension_semantics=("parallel", "arbitrary"),
            vmem_limit_bytes=32 * 1024 * 1024,
        ),
    )(pred2d, gt2d)

    # Tiny final reduction of the per-core (8, 128) partial slabs.
    return jnp.sum(out)


def _focal_loss_ref(pred, gt):
    """Pure-JAX reference mirroring the PyTorch _neg_loss (as given in the spec)."""
    pred = pred.astype(jnp.float32)
    gt = gt.astype(jnp.float32)
    pos_inds = (gt >= 0.5).astype(jnp.float32)
    neg_inds = (gt < 0.5).astype(jnp.float32)
    neg_weights = gt ** 2
    pos_loss = -jnp.log(pred + 0.0001) * (1.0 - pred) ** 2 * pos_inds
    neg_loss = -jnp.log(1.0 - pred + 0.0001) * pred ** 2 * neg_inds * neg_weights
    return pos_loss.sum() + neg_loss.sum()


if __name__ == "__main__":
    key = jax.random.PRNGKey(0)
    k_pred, k_gt = jax.random.split(key)

    B, C, H, W = 2, 4, 16, 16  # NCHW, same convention as the PyTorch module
    # pred: sigmoid-like predictions in (0, 1); gt: heatmap-like targets in [0, 1)
    pred = jax.random.uniform(k_pred, (B, C, H, W), jnp.float32, 0.01, 0.99)
    gt = jax.random.uniform(k_gt, (B, C, H, W), jnp.float32, 0.0, 1.0)

    loss = jax.block_until_ready(focal_loss(pred, gt, src=None))
    ref = _focal_loss_ref(pred, gt)
    assert jnp.allclose(loss, ref, rtol=1e-5, atol=1e-4), (loss, ref)

    # Exercise the bf16 fast path (halves HBM bytes; kernel upcasts in-register).
    pred_bf16 = pred.astype(jnp.bfloat16)
    gt_bf16 = gt.astype(jnp.bfloat16)
    loss_bf16 = jax.block_until_ready(focal_loss(pred_bf16, gt_bf16, src=None))
    ref_bf16 = _focal_loss_ref(pred_bf16, gt_bf16)
    assert jnp.allclose(loss_bf16, ref_bf16, rtol=1e-3, atol=1e-2), (loss_bf16, ref_bf16)

    print("KERNEL_OK")
</pallas_src>

<mosaic_0001>
module attributes {stable_mosaic.version = 11 : i64} {
  func.func @_focal_loss_kernel(%arg0: i32, %arg1: i32, %arg2: memref<16x128xf32, #tpu.memory_space<vmem>>, %arg3: memref<16x128xf32, #tpu.memory_space<vmem>>, %arg4: memref<1x8x128xf32, #tpu.memory_space<vmem>>) attributes {dimension_semantics = [#tpu.dimension_semantics<parallel>, #tpu.dimension_semantics<arbitrary>], iteration_bounds = array<i64: 1, 1>, scalar_prefetch = 0 : i64, scratch_operands = 0 : i64, tpu.core_type = #tpu.core_type<tc>, window_params = [{transform_indices = @transform_0, window_bounds = array<i64: 16, 128>}, {transform_indices = @transform_1, window_bounds = array<i64: 16, 128>}, {transform_indices = @transform_2, window_bounds = array<i64: 1, 8, 128>}]} {
    %c0_i32 = arith.constant 0 : i32
    %0 = arith.cmpi eq, %arg1, %c0_i32 : i32
    %1 = arith.extui %0 : i1 to i32
    %c0_i32_0 = arith.constant 0 : i32
    %2 = arith.cmpi ne, %1, %c0_i32_0 : i32
    scf.if %2 {
      %cst_14 = arith.constant 0.000000e+00 : f32
      %25 = vector.broadcast %cst_14 : f32 to vector<1x8x128xf32>
      %c0_15 = arith.constant 0 : index
      %c0_16 = arith.constant 0 : index
      %c0_17 = arith.constant 0 : index
      %26 = vector.load %arg4[%c0_15, %c0_16, %c0_17] : memref<1x8x128xf32, #tpu.memory_space<vmem>>, vector<1x8x128xf32>
      tpu.vector_store %arg4[%c0_15, %c0_16, %c0_17], %25 {strides = array<i32>} : memref<1x8x128xf32, #tpu.memory_space<vmem>>, vector<1x8x128xf32>,
    } else {
    }
    %c0 = arith.constant 0 : index
    %c0_1 = arith.constant 0 : index
    %3 = vector.load %arg2[%c0, %c0_1] : memref<16x128xf32, #tpu.memory_space<vmem>>, vector<16x128xf32>
    %c0_2 = arith.constant 0 : index
    %c0_3 = arith.constant 0 : index
    %4 = vector.load %arg3[%c0_2, %c0_3] : memref<16x128xf32, #tpu.memory_space<vmem>>, vector<16x128xf32>
    %cst = arith.constant 5.000000e-01 : f32
    %5 = vector.broadcast %cst : f32 to vector<16x128xf32>
    %6 = arith.cmpf oge, %4, %5 : vector<16x128xf32>
    %cst_4 = arith.constant 1.000000e+00 : f32
    %7 = vector.broadcast %cst_4 : f32 to vector<16x128xf32>
    %8 = arith.subf %7, %3 : vector<16x128xf32>
    %9 = arith.select %6, %3, %8 : vector<16x128xi1>, vector<16x128xf32>
    %10 = arith.mulf %3, %4 : vector<16x128xf32>
    %11 = arith.select %6, %8, %10 : vector<16x128xi1>, vector<16x128xf32>
    %cst_5 = arith.constant 9.99999974E-5 : f32
    %12 = vector.broadcast %cst_5 : f32 to vector<16x128xf32>
    %13 = arith.addf %9, %12 : vector<16x128xf32>
    %14 = math.log %13 : vector<16x128xf32>
    %cst_6 = arith.constant 0.000000e+00 : f32
    %15 = vector.broadcast %cst_6 : f32 to vector<16x128xf32>
    %16 = arith.subf %15, %14 : vector<16x128xf32>
    %17 = arith.mulf %11, %11 : vector<16x128xf32>
    %18 = arith.mulf %16, %17 : vector<16x128xf32>
    %c0_7 = arith.constant 0 : index
    %c0_8 = arith.constant 0 : index
    %c0_9 = arith.constant 0 : index
    %19 = vector.load %arg4[%c0_7, %c0_8, %c0_9] : memref<1x8x128xf32, #tpu.memory_space<vmem>>, vector<1x8x128xf32>
    %20 = vector.shape_cast %18 : vector<16x128xf32> to vector<2x8x128xf32>
    %cst_10 = arith.constant dense<0.000000e+00> : vector<8x128xf32>
    %21 = vector.multi_reduction <add>, %20, %cst_10 [0] : vector<2x8x128xf32> to vector<8x128xf32>
    %22 = vector.shape_cast %21 : vector<8x128xf32> to vector<1x8x128xf32>
    %23 = arith.addf %19, %22 : vector<1x8x128xf32>
    %c0_11 = arith.constant 0 : index
    %c0_12 = arith.constant 0 : index
    %c0_13 = arith.constant 0 : index
    %24 = vector.load %arg4[%c0_11, %c0_12, %c0_13] : memref<1x8x128xf32, #tpu.memory_space<vmem>>, vector<1x8x128xf32>
    tpu.vector_store %arg4[%c0_11, %c0_12, %c0_13], %23 {strides = array<i32>} : memref<1x8x128xf32, #tpu.memory_space<vmem>>, vector<1x8x128xf32>,
    return
  }
  func.func @transform_0(%arg0: i32, %arg1: i32) -> (i32, i32) {
    %c1_i32 = arith.constant 1 : i32
    %0 = arith.muli %arg0, %c1_i32 : i32
    %1 = arith.addi %0, %arg1 : i32
    %c0_i32 = arith.constant 0 : i32
    %c0_i32_0 = arith.constant 0 : i32
    return %1, %c0_i32 : i32, i32
  }
  func.func @transform_1(%arg0: i32, %arg1: i32) -> (i32, i32) {
    %c1_i32 = arith.constant 1 : i32
    %0 = arith.muli %arg0, %c1_i32 : i32
    %1 = arith.addi %0, %arg1 : i32
    %c0_i32 = arith.constant 0 : i32
    %c0_i32_0 = arith.constant 0 : i32
    return %1, %c0_i32 : i32, i32
  }
  func.func @transform_2(%arg0: i32, %arg1: i32) -> (i32, i32, i32) {
    %c0_i32 = arith.constant 0 : i32
    %c0_i32_0 = arith.constant 0 : i32
    %c0_i32_1 = arith.constant 0 : i32
    return %arg0, %c0_i32, %c0_i32_0 : i32, i32, i32
  }
}

</mosaic_0001>

<llo_original>
// kernel: tpu_custom_call.1
$region0: #{tpu_custom_call.1}
  #allocation0 [shape = 'u32[]', space=smem, size = 0x4, offset = 0x4, fixed_abs, tag = 'smem constant byte address 0x4 - core index']
  #allocation1 [shape = 'u32[144,128]{1,0:T(1,128)}', space=vmem, size = 0x12000, scoped, tag = 'internal scratch']
  %s0 = inlined_call_operand.hbm [shape: f32[16,128], index: 0, kind: input, shape index: {}]
  %s1 = inlined_call_operand.hbm [shape: f32[16,128], index: 1, kind: input, shape index: {}]
  %s2 = inlined_call_operand.hbm [shape: f32[1,8,128], index: 2, kind: output, shape index: {}]
  %s3 = sld [smem:[#allocation0]]
  $region30: #{tpu_custom_call.1} parent=0
    _
  %s5 = ssub.s32 1, %s3
  %s6 = scalar_select 0, %s5, %s3
  $region1: #{tpu_custom_call.1} parent=0
    #allocation2 [shape = 'u8[8192]{0}', space=vmem, size = 0x2000, scoped, tag = 'input window, operand 0, single buffered']
    #allocation3 [shape = 's32[1]{0}', space=sflag, size = 0x4, scoped, tag = 'scoped memory for tpu_custom_call.1']
    #allocation4 [shape = 's32[1]{0}', space=sflag, size = 0x4, scoped, tag = 'scoped memory for tpu_custom_call.1']
    #allocation5 [shape = 'u8[8192]{0}', space=vmem, size = 0x2000, scoped, tag = 'input window, operand 1, single buffered']
    #allocation6 [shape = 's32[1]{0}', space=sflag, size = 0x4, scoped, tag = 'scoped memory for tpu_custom_call.1']
    #allocation7 [shape = 'u8[4096]{0}', space=vmem, size = 0x1000, scoped, tag = 'output window, operand 0, single buffered']
    %7 = vsyncpa [#allocation3], 0
    %8 = vsyncpa [#allocation6], 0
    %9 = vsyncpa [#allocation4], 0
    // Predicated region
    $region2: #{tpu_custom_call.1} parent=1 // pred_check
      _
    $region3: #{tpu_custom_call.1} parent=1 // pred_check_branch
      %11 = sbr.rel (0) target = $region5
    $region4: #{tpu_custom_call.1} parent=1 // pred_region
      %s12 = sadd.s32 0, 0
      %s13 = smul.u32 2, %s12
      %s15 = ssub.s32 256, 256
      %16 = vsyncadd [#allocation3], %s15
      %s17 = smul.addr %s13, 128
      %s18 = scalar_lea.hbm %s0, %s17
      %s19 = sshll.u32 [#allocation2], 4
      %s20 = int_to_ptr.vmem [resolvable:$true] %s19
      %25 = dma.hbm_to_vmem [thread:$0]  %s18, 256, %s20, [#allocation3], 128, 128, 8
    $region5: #{tpu_custom_call.1} parent=1 // pred_fallthru
      _
    // Predicated region
    $region6: #{tpu_custom_call.1} parent=1 // pred_check
      _
    $region7: #{tpu_custom_call.1} parent=1 // pred_check_branch
      %27 = sbr.rel (0) target = $region9
    $region8: #{tpu_custom_call.1} parent=1 // pred_region
      %s28 = sadd.s32 0, 0
      %s29 = smul.u32 2, %s28
      %s31 = ssub.s32 256, 256
      %32 = vsyncadd [#allocation6], %s31
      %s33 = smul.addr %s29, 128
      %s34 = scalar_lea.hbm %s1, %s33
      %s35 = sshll.u32 [#allocation5], 4
      %s36 = int_to_ptr.vmem [resolvable:$true] %s35
      %41 = dma.hbm_to_vmem [thread:$0]  %s34, 256, %s36, [#allocation6], 128, 128, 8
    $region9: #{tpu_custom_call.1} parent=1 // pred_fallthru
      _
    // Predicated region
    $region10: #{tpu_custom_call.1} parent=1 // pred_check
      _
    $region11: #{tpu_custom_call.1} parent=1 // pred_check_branch
      %43 = sbr.rel (0) target = $region13
    $region12: #{tpu_custom_call.1} parent=1 // pred_region
      %44 = dma.done [#allocation3], 256
    $region13: #{tpu_custom_call.1} parent=1 // pred_fallthru
      _
    // Predicated region
    $region14: #{tpu_custom_call.1} parent=1 // pred_check
      _
    $region15: #{tpu_custom_call.1} parent=1 // pred_check_branch
      %46 = sbr.rel (0) target = $region17
    $region16: #{tpu_custom_call.1} parent=1 // pred_region
      %47 = dma.done [#allocation6], 256
    $region17: #{tpu_custom_call.1} parent=1 // pred_fallthru
      _
    %s48 = sadd.s32 0, 0
    %s49 = smul.u32 2, %s48
    %s50 = sadd.s32 0, 0
    %s51 = smul.u32 2, %s50
    %p52 = scmp.eq.s32.totalorder 0, 0
    // Predicated region
    $region18: #{tpu_custom_call.1} parent=1 // pred_check
      %p53 = pneg %p52
    $region19: #{tpu_custom_call.1} parent=1 // pred_check_branch
      %55 = sbr.rel (%p53) target = $region21
    $region20: #{tpu_custom_call.1} parent=1 // pred_region
      %56 = vst [vmem:[#allocation7] sm:$0xff] 0.0
    $region21: #{tpu_custom_call.1} parent=1 // pred_fallthru
      _
    %v57 = vld [vmem:[#allocation2] sm:$0xff]
    %v58 = vld [vmem:[#allocation2 + $0x8] sm:$0xff]
    %v59 = vld [vmem:[#allocation5] sm:$0xff]
    %v60 = vld [vmem:[#allocation5 + $0x8] sm:$0xff]
    %vm61 = vcmp.ge.f32.partialorder %v59, 0.5
    %vm62 = vcmp.ge.f32.partialorder %v60, 0.5
    %v63 = vsub.f32 1.0, %v57
    %v64 = vsub.f32 1.0, %v58
    %v65 = vsel %vm61, %v57, %v63
    %v66 = vsel %vm62, %v58, %v64
    %v67 = vmul.f32 %v57, %v59
    %v68 = vmul.f32 %v58, %v60
    %v69 = vsel %vm61, %v63, %v67
    %v70 = vsel %vm62, %v64, %v68
    %v71 = vadd.f32 %v65, 0.0001
    %v72 = vadd.f32 %v66, 0.0001
    %v73 = vlog2.pop %v71
    %v74 = vmul.f32 %v73, 0.6931472
    %v75 = vlog2.pop %v72
    %v76 = vmul.f32 %v75, 0.6931472
    %v77 = vsub.f32 0.0, %v74
    %v78 = vsub.f32 0.0, %v76
    %v79 = vmul.f32 %v69, %v69
    %v80 = vmul.f32 %v70, %v70
    %v81 = vmul.f32 %v77, %v79
    %v82 = vmul.f32 %v78, %v80
    %v83 = vld [vmem:[#allocation7] sm:$0xff]
    %v84 = vadd.f32 %v81, %v82
    %v85 = vadd.f32 %v83, %v84
    %86 = vst [vmem:[#allocation7] sm:$0xff] %v85
    // Predicated region
    $region22: #{tpu_custom_call.1} parent=1 // pred_check
      _
    $region23: #{tpu_custom_call.1} parent=1 // pred_check_branch
      %88 = sbr.rel (0) target = $region25
    $region24: #{tpu_custom_call.1} parent=1 // pred_region
      %s90 = ssub.s32 128, 128
      %91 = vsyncadd [#allocation4], %s90
      %s93 = sshll.u32 [#allocation7], 4
      %s94 = int_to_ptr.vmem [resolvable:$true] %s93
      %96 = dma.vmem_to_hbm [thread:$0]  %s94, 128, %s2, [#allocation4]
    $region25: #{tpu_custom_call.1} parent=1 // pred_fallthru
      _
    // Predicated region
    $region26: #{tpu_custom_call.1} parent=1 // pred_check
      _
    $region27: #{tpu_custom_call.1} parent=1 // pred_check_branch
      %98 = sbr.rel (0) target = $region29
    $region28: #{tpu_custom_call.1} parent=1 // pred_region
      %99 = dma.done [#allocation4], 128
    $region29: #{tpu_custom_call.1} parent=1 // pred_fallthru
      _
    %100 = vsyncpa [#allocation3], 1
    %101 = vsyncpa [#allocation6], 1
    %102 = vsyncpa [#allocation4], 1

</llo_original>
